<compile_context>
chip_gen: v5e
topology: v5e:2x2
jax: 0.10.0
libtpu: 0.0.40
codegen_flags: <defaults>
</compile_context>

<pallas_src>
import jax
import jax.numpy as jnp
from jax import lax
from jax.experimental import pallas as pl
from jax.experimental.pallas import tpu as pltpu


def _make_kernel(Cin, Cout, H, W):
    HW = H * W
    # (tap index k = kh*3 + kw, flat offset of that stencil neighbour)
    neigh = [
        (kh * 3 + kw, (kh - 1) * W + (kw - 1))
        for kh in range(3)
        for kw in range(3)
        if not (kh == 1 and kw == 1)
    ]

    def kernel(x_ref, mtap_ref, pw_ref, pb_ref, o_ref):
        # x_ref   : (Cin, H*W)     one flattened image (lane axis = H*W)
        # mtap_ref: (9, Cin, H*W)  masked depthwise taps: tap[c,k] * inbounds[k,p]
        # pw_ref  : (Cout, Cin)    pointwise weights
        # pb_ref  : (Cout, 1)      pointwise bias (depthwise bias folded in)
        # o_ref   : (Cout, H*W)
        f32 = jnp.float32
        x = x_ref[...].astype(f32)

        # ---- depthwise 3x3: 8 lane-rolls, batched over all channels ----
        acc = x * mtap_ref[4]                          # centre tap (mask == 1)
        for k, off in neigh:
            shifted = pltpu.roll(x, (-off) % HW, 1)    # shifted[p] = x[(p+off) % HW]
            acc = acc + shifted * mtap_ref[k]          # wrap-around killed by mask

        # ---- 1x1 pointwise: one small matmul on the otherwise-idle MXU ----
        y = jnp.dot(pw_ref[...], acc, preferred_element_type=f32) + pb_ref[...]
        o_ref[...] = y.astype(o_ref.dtype)             # single lane-dense store

    return kernel


def depthwise_separable_conv(x_nchw, dw_w, dw_b, pw_w, pw_b):
    """
    x_nchw : (N, Cin, H, W)    f32 or bf16
    dw_w   : (Cin, 1, 3, 3)    depthwise weight (PyTorch layout)
    dw_b   : (Cin,)
    pw_w   : (Cout, Cin, 1, 1) pointwise weight (PyTorch layout)
    pw_b   : (Cout,)
    returns: (N, Cout, H, W)   same dtype as x_nchw
    """
    N, Cin, H, W = x_nchw.shape
    Cout = pw_w.shape[0]
    HW = H * W
    f32 = jnp.float32

    # ---- tiny parameter prep (negligible HBM traffic) ----
    dw_taps = dw_w.reshape(Cin, 9).astype(f32)               # (Cin, 9), k = kh*3+kw
    pw_mat = pw_w[:, :, 0, 0].astype(f32)                    # (Cout, Cin)
    pb_eff = (pw_b.astype(f32) + pw_mat @ dw_b.astype(f32)).reshape(Cout, 1)

    # 0/1 in-bounds mask per tap on the flattened plane, folded into the taps
    hh = jnp.arange(H)[:, None]
    ww = jnp.arange(W)[None, :]
    masks = []
    for kh in range(3):
        for kw in range(3):
            mh = (hh + (kh - 1) >= 0) & (hh + (kh - 1) < H)
            mw = (ww + (kw - 1) >= 0) & (ww + (kw - 1) < W)
            masks.append((mh & mw).astype(f32).reshape(HW))
    mask = jnp.stack(masks)                                   # (9, H*W)
    mtap = dw_taps.T[:, :, None] * mask[:, None, :]           # (9, Cin, H*W)

    x_flat = x_nchw.reshape(N, Cin, HW)                       # free metadata reshape

    kernel = _make_kernel(Cin, Cout, H, W)
    out_flat = pl.pallas_call(
        kernel,
        out_shape=jax.ShapeDtypeStruct((N, Cout, HW), x_nchw.dtype),
        grid_spec=pltpu.PrefetchScalarGridSpec(
            num_scalar_prefetch=0,
            grid=(N,),
            in_specs=[
                pl.BlockSpec((None, Cin, HW), lambda b: (b, 0, 0)),   # image
                pl.BlockSpec((9, Cin, HW), lambda b: (0, 0, 0)),      # masked taps
                pl.BlockSpec((Cout, Cin), lambda b: (0, 0)),          # pointwise w
                pl.BlockSpec((Cout, 1), lambda b: (0, 0)),            # fused bias
            ],
            out_specs=pl.BlockSpec((None, Cout, HW), lambda b: (b, 0, 0)),
        ),
        compiler_params=pltpu.CompilerParams(
            dimension_semantics=("parallel",),   # >=2 steps -> both v7x TCs busy
        ),
    )(x_flat, mtap, pw_mat, pb_eff)
    return out_flat.reshape(N, Cout, H, W)


def _reference(x_nchw, dw_w, dw_b, pw_w, pw_b):
    """Pure-JAX reference matching PyTorch Conv2d semantics."""
    Cin = x_nchw.shape[1]
    y = lax.conv_general_dilated(
        x_nchw, dw_w, window_strides=(1, 1), padding=((1, 1), (1, 1)),
        dimension_numbers=("NCHW", "OIHW", "NCHW"),
        feature_group_count=Cin)
    y = y + dw_b[None, :, None, None]
    z = lax.conv_general_dilated(
        y, pw_w, window_strides=(1, 1), padding=((0, 0), (0, 0)),
        dimension_numbers=("NCHW", "OIHW", "NCHW"))
    z = z + pw_b[None, :, None, None]
    return z


if __name__ == "__main__":
    N, Cin, Cout, H, W = 2, 4, 8, 16, 16

    key = jax.random.PRNGKey(0)
    k_x, k_dw, k_db, k_pw, k_pb = jax.random.split(key, 5)

    x = jax.random.normal(k_x, (N, Cin, H, W), dtype=jnp.float32)
    dw_w = 0.1 * jax.random.normal(k_dw, (Cin, 1, 3, 3), dtype=jnp.float32)
    dw_b = 0.1 * jax.random.normal(k_db, (Cin,), dtype=jnp.float32)
    pw_w = 0.1 * jax.random.normal(k_pw, (Cout, Cin, 1, 1), dtype=jnp.float32)
    pw_b = 0.1 * jax.random.normal(k_pb, (Cout,), dtype=jnp.float32)

    # ---- f32 I/O path (tight tolerance) ----
    out = jax.block_until_ready(depthwise_separable_conv(x, dw_w, dw_b, pw_w, pw_b))
    ref = _reference(x, dw_w, dw_b, pw_w, pw_b)
    assert out.shape == (N, Cout, H, W)
    assert jnp.allclose(out, ref, atol=1e-4, rtol=1e-4), "f32 mismatch vs reference"

    # ---- bf16 I/O path (halves HBM traffic on v6e/v7x; f32 accumulation) ----
    x_bf16 = x.astype(jnp.bfloat16)
    out_bf = jax.block_until_ready(
        depthwise_separable_conv(x_bf16, dw_w, dw_b, pw_w, pw_b))
    ref_bf = _reference(x_bf16.astype(jnp.float32), dw_w, dw_b, pw_w, pw_b)
    assert out_bf.dtype == jnp.bfloat16
    assert jnp.allclose(out_bf.astype(jnp.float32), ref_bf, atol=2e-2, rtol=2e-2), \
        "bf16 mismatch vs reference"

    print("KERNEL_OK")
</pallas_src>

<mosaic_0001>
module attributes {stable_mosaic.version = 11 : i64} {
  func.func @kernel(%arg0: i32, %arg1: memref<1x4x256xf32, #tpu.memory_space<vmem>>, %arg2: memref<9x4x256xf32, #tpu.memory_space<vmem>>, %arg3: memref<8x4xf32, #tpu.memory_space<vmem>>, %arg4: memref<8x1xf32, #tpu.memory_space<vmem>>, %arg5: memref<1x8x256xf32, #tpu.memory_space<vmem>>) attributes {dimension_semantics = [#tpu.dimension_semantics<parallel>], iteration_bounds = array<i64: 2>, scalar_prefetch = 0 : i64, scratch_operands = 0 : i64, tpu.core_type = #tpu.core_type<tc>, window_params = [{transform_indices = @transform_0, window_bounds = array<i64: 1, 4, 256>}, {pipeline_mode = #tpu.pipeline_mode<synchronous>, transform_indices = @transform_1, window_bounds = array<i64: 9, 4, 256>}, {pipeline_mode = #tpu.pipeline_mode<synchronous>, transform_indices = @transform_2, window_bounds = array<i64: 8, 4>}, {pipeline_mode = #tpu.pipeline_mode<synchronous>, transform_indices = @transform_3, window_bounds = array<i64: 8, 1>}, {transform_indices = @transform_4, window_bounds = array<i64: 1, 8, 256>}]} {
    %c0 = arith.constant 0 : index
    %c0_0 = arith.constant 0 : index
    %c0_1 = arith.constant 0 : index
    %0 = vector.load %arg1[%c0, %c0_0, %c0_1] : memref<1x4x256xf32, #tpu.memory_space<vmem>>, vector<1x4x256xf32>
    %1 = vector.shape_cast %0 : vector<1x4x256xf32> to vector<4x256xf32>
    %c4 = arith.constant 4 : index
    %c0_2 = arith.constant 0 : index
    %c0_3 = arith.constant 0 : index
    %2 = vector.load %arg2[%c4, %c0_2, %c0_3] : memref<9x4x256xf32, #tpu.memory_space<vmem>>, vector<1x4x256xf32>
    %3 = vector.shape_cast %2 : vector<1x4x256xf32> to vector<4x256xf32>
    %4 = arith.mulf %1, %3 : vector<4x256xf32>
    %c17_i32 = arith.constant 17 : i32
    %5 = tpu.dynamic_rotate %1 by %c17_i32 dim 1 : vector<4x256xf32>, i32 -> vector<4x256xf32>
    %c0_4 = arith.constant 0 : index
    %c0_5 = arith.constant 0 : index
    %c0_6 = arith.constant 0 : index
    %6 = vector.load %arg2[%c0_4, %c0_5, %c0_6] : memref<9x4x256xf32, #tpu.memory_space<vmem>>, vector<1x4x256xf32>
    %7 = vector.shape_cast %6 : vector<1x4x256xf32> to vector<4x256xf32>
    %8 = arith.mulf %5, %7 : vector<4x256xf32>
    %9 = arith.addf %4, %8 : vector<4x256xf32>
    %c16_i32 = arith.constant 16 : i32
    %10 = tpu.dynamic_rotate %1 by %c16_i32 dim 1 : vector<4x256xf32>, i32 -> vector<4x256xf32>
    %c1 = arith.constant 1 : index
    %c0_7 = arith.constant 0 : index
    %c0_8 = arith.constant 0 : index
    %11 = vector.load %arg2[%c1, %c0_7, %c0_8] : memref<9x4x256xf32, #tpu.memory_space<vmem>>, vector<1x4x256xf32>
    %12 = vector.shape_cast %11 : vector<1x4x256xf32> to vector<4x256xf32>
    %13 = arith.mulf %10, %12 : vector<4x256xf32>
    %14 = arith.addf %9, %13 : vector<4x256xf32>
    %c15_i32 = arith.constant 15 : i32
    %15 = tpu.dynamic_rotate %1 by %c15_i32 dim 1 : vector<4x256xf32>, i32 -> vector<4x256xf32>
    %c2 = arith.constant 2 : index
    %c0_9 = arith.constant 0 : index
    %c0_10 = arith.constant 0 : index
    %16 = vector.load %arg2[%c2, %c0_9, %c0_10] : memref<9x4x256xf32, #tpu.memory_space<vmem>>, vector<1x4x256xf32>
    %17 = vector.shape_cast %16 : vector<1x4x256xf32> to vector<4x256xf32>
    %18 = arith.mulf %15, %17 : vector<4x256xf32>
    %19 = arith.addf %14, %18 : vector<4x256xf32>
    %c1_i32 = arith.constant 1 : i32
    %20 = tpu.dynamic_rotate %1 by %c1_i32 dim 1 : vector<4x256xf32>, i32 -> vector<4x256xf32>
    %c3 = arith.constant 3 : index
    %c0_11 = arith.constant 0 : index
    %c0_12 = arith.constant 0 : index
    %21 = vector.load %arg2[%c3, %c0_11, %c0_12] : memref<9x4x256xf32, #tpu.memory_space<vmem>>, vector<1x4x256xf32>
    %22 = vector.shape_cast %21 : vector<1x4x256xf32> to vector<4x256xf32>
    %23 = arith.mulf %20, %22 : vector<4x256xf32>
    %24 = arith.addf %19, %23 : vector<4x256xf32>
    %c255_i32 = arith.constant 255 : i32
    %25 = tpu.dynamic_rotate %1 by %c255_i32 dim 1 : vector<4x256xf32>, i32 -> vector<4x256xf32>
    %c5 = arith.constant 5 : index
    %c0_13 = arith.constant 0 : index
    %c0_14 = arith.constant 0 : index
    %26 = vector.load %arg2[%c5, %c0_13, %c0_14] : memref<9x4x256xf32, #tpu.memory_space<vmem>>, vector<1x4x256xf32>
    %27 = vector.shape_cast %26 : vector<1x4x256xf32> to vector<4x256xf32>
    %28 = arith.mulf %25, %27 : vector<4x256xf32>
    %29 = arith.addf %24, %28 : vector<4x256xf32>
    %c241_i32 = arith.constant 241 : i32
    %30 = tpu.dynamic_rotate %1 by %c241_i32 dim 1 : vector<4x256xf32>, i32 -> vector<4x256xf32>
    %c6 = arith.constant 6 : index
    %c0_15 = arith.constant 0 : index
    %c0_16 = arith.constant 0 : index
    %31 = vector.load %arg2[%c6, %c0_15, %c0_16] : memref<9x4x256xf32, #tpu.memory_space<vmem>>, vector<1x4x256xf32>
    %32 = vector.shape_cast %31 : vector<1x4x256xf32> to vector<4x256xf32>
    %33 = arith.mulf %30, %32 : vector<4x256xf32>
    %34 = arith.addf %29, %33 : vector<4x256xf32>
    %c240_i32 = arith.constant 240 : i32
    %35 = tpu.dynamic_rotate %1 by %c240_i32 dim 1 : vector<4x256xf32>, i32 -> vector<4x256xf32>
    %c7 = arith.constant 7 : index
    %c0_17 = arith.constant 0 : index
    %c0_18 = arith.constant 0 : index
    %36 = vector.load %arg2[%c7, %c0_17, %c0_18] : memref<9x4x256xf32, #tpu.memory_space<vmem>>, vector<1x4x256xf32>
    %37 = vector.shape_cast %36 : vector<1x4x256xf32> to vector<4x256xf32>
    %38 = arith.mulf %35, %37 : vector<4x256xf32>
    %39 = arith.addf %34, %38 : vector<4x256xf32>
    %c239_i32 = arith.constant 239 : i32
    %40 = tpu.dynamic_rotate %1 by %c239_i32 dim 1 : vector<4x256xf32>, i32 -> vector<4x256xf32>
    %c8 = arith.constant 8 : index
    %c0_19 = arith.constant 0 : index
    %c0_20 = arith.constant 0 : index
    %41 = vector.load %arg2[%c8, %c0_19, %c0_20] : memref<9x4x256xf32, #tpu.memory_space<vmem>>, vector<1x4x256xf32>
    %42 = vector.shape_cast %41 : vector<1x4x256xf32> to vector<4x256xf32>
    %43 = arith.mulf %40, %42 : vector<4x256xf32>
    %44 = arith.addf %39, %43 : vector<4x256xf32>
    %c0_21 = arith.constant 0 : index
    %c0_22 = arith.constant 0 : index
    %45 = vector.load %arg3[%c0_21, %c0_22] : memref<8x4xf32, #tpu.memory_space<vmem>>, vector<8x4xf32>
    %cst = arith.constant dense<0.000000e+00> : vector<8x256xf32>
    %46 = tpu.matmul %45, %44, %cst {dimension_numbers = #tpu.dot_dimension_numbers<[1], [0], [0], [1], [0, 0, 1, 1], [], []>} : vector<8x4xf32>, vector<4x256xf32>, vector<8x256xf32> -> vector<8x256xf32>
    %c0_23 = arith.constant 0 : index
    %c0_24 = arith.constant 0 : index
    %47 = vector.load %arg4[%c0_23, %c0_24] : memref<8x1xf32, #tpu.memory_space<vmem>>, vector<8x1xf32>
    %48 = vector.broadcast %47 : vector<8x1xf32> to vector<8x256xf32>
    %49 = arith.addf %46, %48 : vector<8x256xf32>
    %c0_25 = arith.constant 0 : index
    %c0_26 = arith.constant 0 : index
    %c0_27 = arith.constant 0 : index
    %50 = vector.load %arg5[%c0_25, %c0_26, %c0_27] : memref<1x8x256xf32, #tpu.memory_space<vmem>>, vector<1x8x256xf32>
    %51 = vector.shape_cast %50 : vector<1x8x256xf32> to vector<8x256xf32>
    %52 = vector.shape_cast %49 : vector<8x256xf32> to vector<1x8x256xf32>
    tpu.vector_store %arg5[%c0_25, %c0_26, %c0_27], %52 {strides = array<i32>} : memref<1x8x256xf32, #tpu.memory_space<vmem>>, vector<1x8x256xf32>,
    return
  }
  func.func @transform_0(%arg0: i32) -> (i32, i32, i32) {
    %c0_i32 = arith.constant 0 : i32
    %c0_i32_0 = arith.constant 0 : i32
    %c0_i32_1 = arith.constant 0 : i32
    return %arg0, %c0_i32, %c0_i32_0 : i32, i32, i32
  }
  func.func @transform_1(%arg0: i32) -> (i32, i32, i32) {
    %c0_i32 = arith.constant 0 : i32
    %c0_i32_0 = arith.constant 0 : i32
    %c0_i32_1 = arith.constant 0 : i32
    %c0_i32_2 = arith.constant 0 : i32
    return %c0_i32, %c0_i32_0, %c0_i32_1 : i32, i32, i32
  }
  func.func @transform_2(%arg0: i32) -> (i32, i32) {
    %c0_i32 = arith.constant 0 : i32
    %c0_i32_0 = arith.constant 0 : i32
    %c0_i32_1 = arith.constant 0 : i32
    return %c0_i32, %c0_i32_0 : i32, i32
  }
  func.func @transform_3(%arg0: i32) -> (i32, i32) {
    %c0_i32 = arith.constant 0 : i32
    %c0_i32_0 = arith.constant 0 : i32
    %c0_i32_1 = arith.constant 0 : i32
    return %c0_i32, %c0_i32_0 : i32, i32
  }
  func.func @transform_4(%arg0: i32) -> (i32, i32, i32) {
    %c0_i32 = arith.constant 0 : i32
    %c0_i32_0 = arith.constant 0 : i32
    %c0_i32_1 = arith.constant 0 : i32
    return %arg0, %c0_i32, %c0_i32_0 : i32, i32, i32
  }
}

</mosaic_0001>

<llo_original>
// kernel: tpu_custom_call.1
$region0: #{tpu_custom_call.1}
  #allocation0 [shape = 'u32[]', space=smem, size = 0x4, offset = 0x4, fixed_abs, tag = 'smem constant byte address 0x4 - core index']
  #allocation1 [shape = 'u32[72,128]{1,0:T(1,128)}', space=vmem, size = 0x9000, scoped, tag = 'internal scratch']
  %s0 = inlined_call_operand.vmem [shape: f32[2,4,256], index: 0, kind: input, shape index: {}]
  %s1 = inlined_call_operand.hbm [shape: f32[9,4,256], index: 1, kind: input, shape index: {}]
  %s2 = inlined_call_operand.vmem [shape: f32[8,4], index: 2, kind: input, shape index: {}]
  %s3 = inlined_call_operand.vmem [shape: f32[8,1], index: 3, kind: input, shape index: {}]
  %s4 = inlined_call_operand.hbm [shape: f32[2,8,256], index: 4, kind: output, shape index: {}]
  %s5 = sld [smem:[#allocation0]]
  $region53: #{tpu_custom_call.1} parent=0
    _
  %s7 = ssub.s32 1, %s5
  %s8 = scalar_select 0, %s7, %s5
  $region1: #{tpu_custom_call.1} parent=0
    #allocation2 [shape = 'u8[36864]{0}', space=vmem, size = 0x9000, scoped, tag = 'input window, operand 1, single buffered']
    #allocation3 [shape = 's32[2]{0}', space=sflag, size = 0x8, scoped, tag = 'scoped memory for tpu_custom_call.1']
    #allocation4 [shape = 's32[2]{0}', space=sflag, size = 0x8, scoped, tag = 'scoped memory for tpu_custom_call.1']
    #allocation5 [shape = 'u8[16384]{0}', space=vmem, size = 0x4000, scoped, tag = 'output window, operand 0']
    %9 = vsyncpa [#allocation3], 0
    %10 = vsyncpa [#allocation4], 0
    %s11 = scalar_lea.sflag [#allocation4], 1
    %12 = vsyncpa %s11, 0
    loop: start=0, step=1, limit=4
    $region2: #{tpu_custom_call.1} parent=1 // loop_pre_header
      _
    $region3: #{tpu_custom_call.1} parent=1 // loop_header
      %s14 = sphi 0, %s18
      %p15 = scmp.ge.s32.totalorder %s14, 4
      %s24 = sphi 0, %s26
      %s27 = sphi 0, %s24
      %s28 = sphi 0, %s27
      %s44 = sphi 0, %s28
      %s48 = sphi 0, %s48
      %s50 = sphi 0, %s48
      %s51 = sphi 0, %s50
      %s65 = sphi 0, %s51
      %s69 = sphi 0, %s69
      %s71 = sphi 0, %s69
      %s72 = sphi 0, %s71
      %s86 = sphi 0, %s72
      %s90 = sphi 0, %s90
      %s92 = sphi 0, %s90
      %s93 = sphi 0, %s92
      %s107 = sphi 0, %s93
      %s113 = sphi 0, %s115
      %s116 = sphi 0, %s113
      %s117 = sphi 0, %s116
      %s133 = sphi 0, %s117
    $region4: #{tpu_custom_call.1} parent=1 // loop_header_branch
      %17 = sbr.rel (%p15) target = $region8
    $region5: #{tpu_custom_call.1} parent=1 // loop_body
      %s19 = ssub.s32 %s14, 1
      %s20 = ssub.s32 %s14, 2
      %s21 = sadd.s32 %s14, 1
      %s22 = ssub.s32 %s14, %s21
      %p23 = scmp.eq.s32.totalorder %s22, 0
      %s25 = sadd.s32 %s24, 1
      %s26 = scalar_select %p23, %s24, %s25
      %p29 = pneg %p23
      %p30 = scmp.eq.s32.totalorder %s14, 1
      %p31 = por %p29, %p30
      %p32 = scmp.ne.s32.totalorder %s24, %s27
      %p33 = scmp.eq.s32.totalorder %s14, 0
      %p34 = por %p32, %p33
      %p35 = scmp.ne.s32.totalorder %s24, %s27
      %p36 = scmp.eq.s32.totalorder %s19, 1
      %p37 = por %p35, %p36
      %p38 = scmp.ne.s32.totalorder %s27, %s28
      %p39 = scmp.eq.s32.totalorder %s19, 0
      %p40 = por %p38, %p39
      %p41 = scmp.ne.s32.totalorder %s27, %s28
      %p42 = scmp.eq.s32.totalorder %s20, 1
      %p43 = por %p41, %p42
      %p45 = scmp.ne.s32.totalorder %s28, %s44
      %p46 = scmp.eq.s32.totalorder %s20, 0
      %p47 = por %p45, %p46
      %s49 = sadd.s32 %s48, 1
      %p52 = scmp.eq.s32.totalorder %s14, 1
      %p53 = scmp.ne.s32.totalorder %s48, %s50
      %p54 = scmp.eq.s32.totalorder %s14, 0
      %p55 = por %p53, %p54
      %p56 = scmp.ne.s32.totalorder %s48, %s50
      %p57 = scmp.eq.s32.totalorder %s19, 1
      %p58 = por %p56, %p57
      %p59 = scmp.ne.s32.totalorder %s50, %s51
      %p60 = scmp.eq.s32.totalorder %s19, 0
      %p61 = por %p59, %p60
      %p62 = scmp.ne.s32.totalorder %s50, %s51
      %p63 = scmp.eq.s32.totalorder %s20, 1
      %p64 = por %p62, %p63
      %p66 = scmp.ne.s32.totalorder %s51, %s65
      %p67 = scmp.eq.s32.totalorder %s20, 0
      %p68 = por %p66, %p67
      %s70 = sadd.s32 %s69, 1
      %p73 = scmp.eq.s32.totalorder %s14, 1
      %p74 = scmp.ne.s32.totalorder %s69, %s71
      %p75 = scmp.eq.s32.totalorder %s14, 0
      %p76 = por %p74, %p75
      %p77 = scmp.ne.s32.totalorder %s69, %s71
      %p78 = scmp.eq.s32.totalorder %s19, 1
      %p79 = por %p77, %p78
      %p80 = scmp.ne.s32.totalorder %s71, %s72
      %p81 = scmp.eq.s32.totalorder %s19, 0
      %p82 = por %p80, %p81
      %p83 = scmp.ne.s32.totalorder %s71, %s72
      %p84 = scmp.eq.s32.totalorder %s20, 1
      %p85 = por %p83, %p84
      %p87 = scmp.ne.s32.totalorder %s72, %s86
      %p88 = scmp.eq.s32.totalorder %s20, 0
      %p89 = por %p87, %p88
      %s91 = sadd.s32 %s90, 1
      %p94 = scmp.eq.s32.totalorder %s14, 1
      %p95 = scmp.ne.s32.totalorder %s90, %s92
      %p96 = scmp.eq.s32.totalorder %s14, 0
      %p97 = por %p95, %p96
      %p98 = scmp.ne.s32.totalorder %s90, %s92
      %p99 = scmp.eq.s32.totalorder %s19, 1
      %p100 = por %p98, %p99
      %p101 = scmp.ne.s32.totalorder %s92, %s93
      %p102 = scmp.eq.s32.totalorder %s19, 0
      %p103 = por %p101, %p102
      %p104 = scmp.ne.s32.totalorder %s92, %s93
      %p105 = scmp.eq.s32.totalorder %s20, 1
      %p106 = por %p104, %p105
      %p108 = scmp.ne.s32.totalorder %s93, %s107
      %p109 = scmp.eq.s32.totalorder %s20, 0
      %p110 = por %p108, %p109
      %s111 = ssub.s32 %s14, %s21
      %p112 = scmp.eq.s32.totalorder %s111, 0
      %s114 = sadd.s32 %s113, 1
      %s115 = scalar_select %p112, %s113, %s114
      %p118 = pneg %p112
      %p119 = scmp.eq.s32.totalorder %s14, 1
      %p120 = por %p118, %p119
      %p121 = scmp.ne.s32.totalorder %s113, %s116
      %p122 = scmp.eq.s32.totalorder %s14, 0
      %p123 = por %p121, %p122
      %p124 = scmp.ne.s32.totalorder %s113, %s116
      %p125 = scmp.eq.s32.totalorder %s19, 1
      %p126 = por %p124, %p125
      %p127 = scmp.ne.s32.totalorder %s116, %s117
      %p128 = scmp.eq.s32.totalorder %s19, 0
      %p129 = por %p127, %p128
      %p130 = scmp.ne.s32.totalorder %s116, %s117
      %p131 = scmp.eq.s32.totalorder %s20, 1
      %p132 = por %p130, %p131
      %p134 = scmp.ne.s32.totalorder %s117, %s133
      %p135 = scmp.eq.s32.totalorder %s20, 0
      %p136 = por %p134, %p135
      %p137 = scmp.le.s32.totalorder 1, %s14
      %p138 = scmp.lt.s32.totalorder %s14, 3
      %p139 = pnand %p137, %p138
      %p140 = pneg %p139
      // Predicated region
      $region9: #{tpu_custom_call.1} parent=5 // pred_check
        _
      $region10: #{tpu_custom_call.1} parent=5 // pred_check_branch
        %142 = sbr.rel (%p139) target = $region12
      $region11: #{tpu_custom_call.1} parent=5 // pred_region
        %s143 = ssub.s32 %s14, 1
        // Predicated region
        $region13: #{tpu_custom_call.1} parent=11 // pred_check
          %p144 = pneg %p61
        $region14: #{tpu_custom_call.1} parent=11 // pred_check_branch
          %146 = sbr.rel (%p144) target = $region16
        $region15: #{tpu_custom_call.1} parent=11 // pred_region
          %148 = vsyncadd [#allocation3], 0
          %s149 = sshll.u32 %s1, 4
          %s150 = int_to_ptr.hbm [resolvable:$true] %s149
          %s151 = sshll.u32 [#allocation2], 4
          %s152 = int_to_ptr.vmem [resolvable:$true] %s151
          %157 = dma.hbm_to_vmem [thread:$0]  %s150, 1152, %s152, [#allocation3], 128, 128, 8
        $region16: #{tpu_custom_call.1} parent=11 // pred_fallthru
          _
        // Predicated region
        $region17: #{tpu_custom_call.1} parent=11 // pred_check
          %p158 = pneg %p82
        $region18: #{tpu_custom_call.1} parent=11 // pred_check_branch
          %160 = sbr.rel (%p158) target = $region20
        $region19: #{tpu_custom_call.1} parent=11 // pred_region
          _
        $region20: #{tpu_custom_call.1} parent=11 // pred_fallthru
          _
        // Predicated region
        $region21: #{tpu_custom_call.1} parent=11 // pred_check
          %p161 = pneg %p103
        $region22: #{tpu_custom_call.1} parent=11 // pred_check_branch
          %163 = sbr.rel (%p161) target = $region24
        $region23: #{tpu_custom_call.1} parent=11 // pred_region
          _
        $region24: #{tpu_custom_call.1} parent=11 // pred_fallthru
          _
      $region12: #{tpu_custom_call.1} parent=5 // pred_fallthru
        _
      %p164 = scmp.lt.s32.totalorder %s14, 2
      // Predicated region
      $region25: #{tpu_custom_call.1} parent=5 // pred_check
        %p165 = pneg %p164
      $region26: #{tpu_custom_call.1} parent=5 // pred_check_branch
        %167 = sbr.rel (%p165) target = $region28
      $region27: #{tpu_custom_call.1} parent=5 // pred_region
        // Predicated region
        $region29: #{tpu_custom_call.1} parent=27 // pred_check
          %p168 = pneg %p34
        $region30: #{tpu_custom_call.1} parent=27 // pred_check_branch
          %170 = sbr.rel (%p168) target = $region32
        $region31: #{tpu_custom_call.1} parent=27 // pred_region
          %p171 = scmp.lt.s32.totalorder %s14, 1
          %s172 = scalar_select %p171, %s14, 1
          %s173 = smul.addr %s172, 2
          %s174 = smul.addr %s173, 4
          %s175 = scalar_lea.vmem %s0, %s174
        $region32: #{tpu_custom_call.1} parent=27 // pred_fallthru
          _
      $region28: #{tpu_custom_call.1} parent=5 // pred_fallthru
        _
      %p176 = scmp.le.s32.totalorder 1, %s14
      %p177 = scmp.lt.s32.totalorder %s14, 3
      %p178 = pnand %p176, %p177
      %p179 = pneg %p178
      // Predicated region
      $region33: #{tpu_custom_call.1} parent=5 // pred_check
        _
      $region34: #{tpu_custom_call.1} parent=5 // pred_check_branch
        %181 = sbr.rel (%p178) target = $region36
      $region35: #{tpu_custom_call.1} parent=5 // pred_region
        %s182 = ssub.s32 %s14, 1
        // Predicated region
        $region37: #{tpu_custom_call.1} parent=35 // pred_check
          %p183 = pneg %p61
        $region38: #{tpu_custom_call.1} parent=35 // pred_check_branch
          %185 = sbr.rel (%p183) target = $region40
        $region39: #{tpu_custom_call.1} parent=35 // pred_region
          %187 = dma.done [#allocation3], 1152
        $region40: #{tpu_custom_call.1} parent=35 // pred_fallthru
          _
        %p188 = scmp.lt.s32.totalorder %s19, 1
        %s189 = scalar_select %p188, %s19, 1
        %s190 = smul.addr %s189, 2
        %s191 = smul.addr %s190, 4
        %s192 = scalar_lea.vmem %s0, %s191
        %p193 = pneg %p40
        %p194 = pneg %p37
        %p195 = pneg %p61
        %p196 = pneg %p58
        %p197 = pneg %p82
        %p198 = pneg %p79
        %p199 = pneg %p103
        %p200 = pneg %p100
        %p201 = pneg %p129
        %p202 = pneg %p126
        %s203 = sand.u32 %s116, 1
        %s204 = scalar_lea.sflag [#allocation4], %s203
        %s205 = sand.u32 %s116, 1
        %s206 = smul.addr %s205, 16
        %s207 = scalar_lea.vmem [#allocation5], %s206
        %p208 = scmp.lt.s32.totalorder %s19, 1
        %s209 = scalar_select %p208, %s19, 1
        %s210 = smul.addr %s209, 2
        %s211 = smul.addr %s210, 4
        %s212 = scalar_lea.vmem %s0, %s211
        %v213 = vld [vmem:[%s212] sm:$0xff]
        %s214 = scalar_lea.vmem [#allocation2], 32
        %v215 = vld [vmem:[%s214] sm:$0xff]
        %v216 = vmul.f32 %v213, %v215
        %218 = vst [vmem:[#allocation1] ss:$2 sm:$0xff] %v213
        %v219 = vld.sshfl [vmem:[#allocation1] sm:$0xff pattern:$0x75316420]
        %v220 = vld.sshfl [vmem:[#allocation1 + $0x8] sm:$0xff pattern:$0x75316420]
        %223 = vrot.lane.b32.xlu0 %v219, 17
        %v224 = vpop.permute.xlu0 %223
        %225 = vrot.lane.b32.xlu0 %v220, 17
        %v226 = vpop.permute.xlu0 %225
        %v227 = vlaneseq
        %v228 = vand.u32 %v227, 127
        %vm229 = vcmp.lt.s32.totalorder %v228, 17
        %v230 = vsel %vm229, %v224, %v226
        %v231 = vsel %vm229, %v226, %v224
        %v232 = vld [vmem:[#allocation2] sm:$0xff]
        %234 = vst [vmem:[#allocation1] ss:$2 sm:$0xff] %v232
        %v235 = vld.sshfl [vmem:[#allocation1] sm:$0xff pattern:$0x75316420]
        %v236 = vld.sshfl [vmem:[#allocation1 + $0x8] sm:$0xff pattern:$0x75316420]
        %v239 = vmul.f32 %v231, %v235
        %v240 = vmul.f32 %v230, %v236
        %v243 = vrot.slane %v240, 4
        %vm244 = vcmask 1043456
        %v245 = vsel %vm244, %v239, %v243
        %v247 = vadd.f32 %v216, %v245
        %248 = vst [vmem:[#allocation1] ss:$2 sm:$0xff] %v213
        %v249 = vld.sshfl [vmem:[#allocation1] sm:$0xff pattern:$0x75316420]
        %v250 = vld.sshfl [vmem:[#allocation1 + $0x8] sm:$0xff pattern:$0x75316420]
        %253 = vrot.lane.b32.xlu0 %v249, 16
        %v254 = vpop.permute.xlu0 %253
        %255 = vrot.lane.b32.xlu0 %v250, 16
        %v256 = vpop.permute.xlu0 %255
        %vm257 = vcmp.lt.s32.totalorder %v228, 16
        %v258 = vsel %vm257, %v254, %v256
        %v259 = vsel %vm257, %v256, %v254
        %s260 = scalar_lea.vmem [#allocation2], 8
        %v261 = vld [vmem:[%s260] sm:$0xff]
        %263 = vst [vmem:[#allocation1] ss:$2 sm:$0xff] %v261
        %v264 = vld.sshfl [vmem:[#allocation1] sm:$0xff pattern:$0x75316420]
        %v265 = vld.sshfl [vmem:[#allocation1 + $0x8] sm:$0xff pattern:$0x75316420]
        %v268 = vmul.f32 %v259, %v264
        %v269 = vmul.f32 %v258, %v265
        %v272 = vrot.slane %v269, 4
        %v273 = vsel %vm244, %v268, %v272
        %v275 = vadd.f32 %v247, %v273
        %276 = vst [vmem:[#allocation1] ss:$2 sm:$0xff] %v213
        %v277 = vld.sshfl [vmem:[#allocation1] sm:$0xff pattern:$0x75316420]
        %v278 = vld.sshfl [vmem:[#allocation1 + $0x8] sm:$0xff pattern:$0x75316420]
        %281 = vrot.lane.b32.xlu0 %v277, 15
        %v282 = vpop.permute.xlu0 %281
        %283 = vrot.lane.b32.xlu0 %v278, 15
        %v284 = vpop.permute.xlu0 %283
        %vm285 = vcmp.lt.s32.totalorder %v228, 15
        %v286 = vsel %vm285, %v282, %v284
        %v287 = vsel %vm285, %v284, %v282
        %s288 = scalar_lea.vmem [#allocation2], 16
        %v289 = vld [vmem:[%s288] sm:$0xff]
        %291 = vst [vmem:[#allocation1] ss:$2 sm:$0xff] %v289
        %v292 = vld.sshfl [vmem:[#allocation1] sm:$0xff pattern:$0x75316420]
        %v293 = vld.sshfl [vmem:[#allocation1 + $0x8] sm:$0xff pattern:$0x75316420]
        %v296 = vmul.f32 %v287, %v292
        %v297 = vmul.f32 %v286, %v293
        %v300 = vrot.slane %v297, 4
        %v301 = vsel %vm244, %v296, %v300
        %v303 = vadd.f32 %v275, %v301
        %304 = vst [vmem:[#allocation1] ss:$2 sm:$0xff] %v213
        %v305 = vld.sshfl [vmem:[#allocation1] sm:$0xff pattern:$0x75316420]
        %v306 = vld.sshfl [vmem:[#allocation1 + $0x8] sm:$0xff pattern:$0x75316420]
        %309 = vrot.lane.b32.xlu0 %v305, 1
        %v310 = vpop.permute.xlu0 %309
        %311 = vrot.lane.b32.xlu0 %v306, 1
        %v312 = vpop.permute.xlu0 %311
        %vm313 = vcmp.lt.s32.totalorder %v228, 1
        %v314 = vsel %vm313, %v310, %v312
        %v315 = vsel %vm313, %v312, %v310
        %s316 = scalar_lea.vmem [#allocation2], 24
        %v317 = vld [vmem:[%s316] sm:$0xff]
        %319 = vst [vmem:[#allocation1] ss:$2 sm:$0xff] %v317
        %v320 = vld.sshfl [vmem:[#allocation1] sm:$0xff pattern:$0x75316420]
        %v321 = vld.sshfl [vmem:[#allocation1 + $0x8] sm:$0xff pattern:$0x75316420]
        %v324 = vmul.f32 %v315, %v320
        %v325 = vmul.f32 %v314, %v321
        %v328 = vrot.slane %v325, 4
        %v329 = vsel %vm244, %v324, %v328
        %v331 = vadd.f32 %v303, %v329
        %332 = vst [vmem:[#allocation1] ss:$2 sm:$0xff] %v213
        %v333 = vld.sshfl [vmem:[#allocation1] sm:$0xff pattern:$0x75316420]
        %v334 = vld.sshfl [vmem:[#allocation1 + $0x8] sm:$0xff pattern:$0x75316420]
        %337 = vrot.lane.b32.xlu0 %v333, 127
        %v338 = vpop.permute.xlu0 %337
        %339 = vrot.lane.b32.xlu0 %v334, 127
        %v340 = vpop.permute.xlu0 %339
        %vm341 = vcmp.lt.s32.totalorder %v228, 127
        %v342 = vsel %vm341, %v338, %v340
        %v343 = vsel %vm341, %v340, %v338
        %s344 = scalar_lea.vmem [#allocation2], 40
        %v345 = vld [vmem:[%s344] sm:$0xff]
        %347 = vst [vmem:[#allocation1] ss:$2 sm:$0xff] %v345
        %v348 = vld.sshfl [vmem:[#allocation1] sm:$0xff pattern:$0x75316420]
        %v349 = vld.sshfl [vmem:[#allocation1 + $0x8] sm:$0xff pattern:$0x75316420]
        %v352 = vmul.f32 %v342, %v348
        %v353 = vmul.f32 %v343, %v349
        %v356 = vrot.slane %v353, 4
        %v357 = vsel %vm244, %v352, %v356
        %v359 = vadd.f32 %v331, %v357
        %360 = vst [vmem:[#allocation1] ss:$2 sm:$0xff] %v213
        %v361 = vld.sshfl [vmem:[#allocation1] sm:$0xff pattern:$0x75316420]
        %v362 = vld.sshfl [vmem:[#allocation1 + $0x8] sm:$0xff pattern:$0x75316420]
        %365 = vrot.lane.b32.xlu0 %v361, 113
        %v366 = vpop.permute.xlu0 %365
        %367 = vrot.lane.b32.xlu0 %v362, 113
        %v368 = vpop.permute.xlu0 %367
        %vm369 = vcmp.lt.s32.totalorder %v228, 113
        %v370 = vsel %vm369, %v366, %v368
        %v371 = vsel %vm369, %v368, %v366
        %s372 = scalar_lea.vmem [#allocation2], 48
        %v373 = vld [vmem:[%s372] sm:$0xff]
        %375 = vst [vmem:[#allocation1] ss:$2 sm:$0xff] %v373
        %v376 = vld.sshfl [vmem:[#allocation1] sm:$0xff pattern:$0x75316420]
        %v377 = vld.sshfl [vmem:[#allocation1 + $0x8] sm:$0xff pattern:$0x75316420]
        %v380 = vmul.f32 %v370, %v376
        %v381 = vmul.f32 %v371, %v377
        %v384 = vrot.slane %v381, 4
        %v385 = vsel %vm244, %v380, %v384
        %v387 = vadd.f32 %v359, %v385
        %388 = vst [vmem:[#allocation1] ss:$2 sm:$0xff] %v213
        %v389 = vld.sshfl [vmem:[#allocation1] sm:$0xff pattern:$0x75316420]
        %v390 = vld.sshfl [vmem:[#allocation1 + $0x8] sm:$0xff pattern:$0x75316420]
        %393 = vrot.lane.b32.xlu0 %v389, 112
        %v394 = vpop.permute.xlu0 %393
        %395 = vrot.lane.b32.xlu0 %v390, 112
        %v396 = vpop.permute.xlu0 %395
        %vm397 = vcmp.lt.s32.totalorder %v228, 112
        %v398 = vsel %vm397, %v394, %v396
        %v399 = vsel %vm397, %v396, %v394
        %s400 = scalar_lea.vmem [#allocation2], 56
        %v401 = vld [vmem:[%s400] sm:$0xff]
        %403 = vst [vmem:[#allocation1] ss:$2 sm:$0xff] %v401
        %v404 = vld.sshfl [vmem:[#allocation1] sm:$0xff pattern:$0x75316420]
        %v405 = vld.sshfl [vmem:[#allocation1 + $0x8] sm:$0xff pattern:$0x75316420]
        %v408 = vmul.f32 %v398, %v404
        %v409 = vmul.f32 %v399, %v405
        %v412 = vrot.slane %v409, 4
        %v413 = vsel %vm244, %v408, %v412
        %v415 = vadd.f32 %v387, %v413
        %416 = vst [vmem:[#allocation1] ss:$2 sm:$0xff] %v213
        %v417 = vld.sshfl [vmem:[#allocation1] sm:$0xff pattern:$0x75316420]
        %v418 = vld.sshfl [vmem:[#allocation1 + $0x8] sm:$0xff pattern:$0x75316420]
        %421 = vrot.lane.b32.xlu0 %v417, 111
        %v422 = vpop.permute.xlu0 %421
        %423 = vrot.lane.b32.xlu0 %v418, 111
        %v424 = vpop.permute.xlu0 %423
        %vm425 = vcmp.lt.s32.totalorder %v228, 111
        %v426 = vsel %vm425, %v422, %v424
        %v427 = vsel %vm425, %v424, %v422
        %s428 = scalar_lea.vmem [#allocation2], 64
        %v429 = vld [vmem:[%s428] sm:$0xff]
        %431 = vst [vmem:[#allocation1] ss:$2 sm:$0xff] %v429
        %v432 = vld.sshfl [vmem:[#allocation1] sm:$0xff pattern:$0x75316420]
        %v433 = vld.sshfl [vmem:[#allocation1 + $0x8] sm:$0xff pattern:$0x75316420]
        %v436 = vmul.f32 %v426, %v432
        %v437 = vmul.f32 %v427, %v433
        %v440 = vrot.slane %v437, 4
        %v441 = vsel %vm244, %v436, %v440
        %v443 = vadd.f32 %v415, %v441
        %v444 = vld [vmem:[%s2] sm:$0xff]
        %v445 = vld [vmem:[%s3] sm:$0xff]
        %447 = vset.pattern.permute.xlu0 0
        %448 = vperm.xlu0 %447, %v445
        %v449 = vpop.permute.xlu0 %448
        %452 = vst [vmem:[#allocation1] ss:$2 sm:$0xff] %v443
        %v453 = vld.sshfl [vmem:[#allocation1] sm:$0xff pattern:$0x75316420]
        %v454 = vld.sshfl [vmem:[#allocation1 + $0x8] sm:$0xff pattern:$0x75316420]
        %vm455 = vcmask 31744
        %v457 = vsel %vm455, %v444, 0
        %v459 = vsel %vm244, %v453, 0
        %v461 = vsel %vm244, %v454, 0
        %463 = vmatpush.msra.mxu0 0.0
        %464 = vmatpush.msra.mxu0 0.0
        %465 = vmatpush.msra.mxu0 0.0
        %466 = vmatpush.msra.mxu0 0.0
        %467 = vmatpush.msra.mxu0 0.0
        %468 = vmatpush.msra.mxu0 0.0
        %469 = vmatpush.msra.mxu0 0.0
        %470 = vmatpush.msra.mxu0 0.0
        %471 = vmatpush.msra.mxu0 0.0
        %472 = vmatpush.msra.mxu0 0.0
        %473 = vmatpush.msra.mxu0 0.0
        %474 = vmatpush.msra.mxu0 0.0
        %475 = vmatpush.msra.mxu0 0.0
        %476 = vmatpush.msra.mxu0 0.0
        %477 = vmatpush.msra.mxu0 0.0
        %478 = vmatpush.msra.mxu0 %v459
        %479 = vmatmul.f32.gmra.mxu0 %v457
        %v480 = vpop.f32.mrf.mxu0
        %v481 = vadd.f32 %v449, %v480
        %482 = vdwg.mxu0
        %483 = vmatpush.msra.mxu0 0.0
        %484 = vmatpush.msra.mxu0 0.0
        %485 = vmatpush.msra.mxu0 0.0
        %486 = vmatpush.msra.mxu0 0.0
        %487 = vmatpush.msra.mxu0 0.0
        %488 = vmatpush.msra.mxu0 0.0
        %489 = vmatpush.msra.mxu0 0.0
        %490 = vmatpush.msra.mxu0 0.0
        %491 = vmatpush.msra.mxu0 0.0
        %492 = vmatpush.msra.mxu0 0.0
        %493 = vmatpush.msra.mxu0 0.0
        %494 = vmatpush.msra.mxu0 0.0
        %495 = vmatpush.msra.mxu0 0.0
        %496 = vmatpush.msra.mxu0 0.0
        %497 = vmatpush.msra.mxu0 0.0
        %498 = vmatpush.msra.mxu0 %v461
        %499 = vmatmul.f32.gmra.mxu0 %v457
        %v500 = vpop.f32.mrf.mxu0
        %v501 = vadd.f32 %v449, %v500
        %502 = vdwg.mxu0
        %503 = vst [vmem:[%s207] sm:$0xff] %v481
        %504 = vst [vmem:[%s207 + $0x8] sm:$0xff] %v501
        %s505 = sand.u32 %s116, 1
        %s506 = scalar_lea.sflag [#allocation4], %s505
        %s507 = sand.u32 %s116, 1
        %s508 = smul.addr %s507, 16
        %s509 = scalar_lea.vmem [#allocation5], %s508
        // Predicated region
        $region41: #{tpu_custom_call.1} parent=35 // pred_check
          %p510 = pneg %p126
        $region42: #{tpu_custom_call.1} parent=35 // pred_check_branch
          %512 = sbr.rel (%p510) target = $region44
        $region43: #{tpu_custom_call.1} parent=35 // pred_region
          %514 = vsyncadd %s506, 0
          %s515 = smul.addr %s19, 2
          %s516 = smul.addr %s515, 8
          %s517 = scalar_lea.hbm %s4, %s516
          %s519 = sshll.u32 %s509, 4
          %s520 = int_to_ptr.vmem [resolvable:$true] %s519
          %s521 = sshll.u32 %s517, 4
          %s522 = int_to_ptr.hbm [resolvable:$true] %s521
          %524 = dma.vmem_to_hbm [thread:$0]  %s520, 256, %s522, %s506
        $region44: #{tpu_custom_call.1} parent=35 // pred_fallthru
          _
      $region36: #{tpu_custom_call.1} parent=5 // pred_fallthru
        _
      %p525 = scmp.le.s32.totalorder 2, %s14
      // Predicated region
      $region45: #{tpu_custom_call.1} parent=5 // pred_check
        %p526 = pneg %p525
      $region46: #{tpu_custom_call.1} parent=5 // pred_check_branch
        %528 = sbr.rel (%p526) target = $region48
      $region47: #{tpu_custom_call.1} parent=5 // pred_region
        %s529 = ssub.s32 %s14, 2
        // Predicated region
        $region49: #{tpu_custom_call.1} parent=47 // pred_check
          %p530 = pneg %p132
        $region50: #{tpu_custom_call.1} parent=47 // pred_check_branch
          %532 = sbr.rel (%p530) target = $region52
        $region51: #{tpu_custom_call.1} parent=47 // pred_region
          %s533 = sand.u32 %s117, 1
          %s534 = scalar_lea.sflag [#allocation4], %s533
          %s535 = sand.u32 %s117, 1
          %s536 = smul.addr %s535, 16
          %s537 = scalar_lea.vmem [#allocation5], %s536
          %539 = dma.done %s534, 256
        $region52: #{tpu_custom_call.1} parent=47 // pred_fallthru
          _
      $region48: #{tpu_custom_call.1} parent=5 // pred_fallthru
        _
    $region6: #{tpu_custom_call.1} parent=1 // loop_footer
      %s18 = sadd.s32 1, %s14
    $region7: #{tpu_custom_call.1} parent=1 // loop_footer_branch
      %13 = sbr.rel target = $region3
    $region8: #{tpu_custom_call.1} parent=1 // loop_exit
      _
    %540 = vsyncpa [#allocation3], 1
    %s541 = scalar_lea.sflag [#allocation3], 1
    %542 = vsyncpa %s541, 1
    %543 = vsyncpa [#allocation4], 1
    %s544 = scalar_lea.sflag [#allocation4], 1
    %545 = vsyncpa %s544, 1

</llo_original>
